<compile_context>
chip_gen: v7x
topology: tpu7x:2x2x1
jax: 0.10.0
libtpu: 0.0.40
codegen_flags: <defaults>
</compile_context>

<pallas_src>
import math

import jax
import jax.numpy as jnp
from jax.experimental import pallas as pl
from jax.experimental.pallas import tpu as pltpu

_LANE = 128
_SUBLANE = 8
_SQRT_2_OVER_PI = math.sqrt(2.0 / math.pi)


def _round_up(v, m):
    return ((v + m - 1) // m) * m


def _gelu_tanh(x):
    # tanh-approx GELU: tanh runs on the EUP (separate VLIW slot).
    return 0.5 * x * (1.0 + jnp.tanh(_SQRT_2_OVER_PI * (x + 0.044715 * x * x * x)))


def mlp_kernel(x_ref,
               w1_ref, b1_ref,
               w2_ref, b2_ref,
               w3_ref, b3_ref,
               w4_ref, b4_ref,
               w5_ref, b5_ref,
               o_ref):
    # bf16 operands into the MXU, f32 accumulation, f32 bias/activation,
    # bf16 carried between layers.
    h = x_ref[...].astype(jnp.bfloat16)

    h = jnp.dot(h, w1_ref[...], preferred_element_type=jnp.float32) + b1_ref[...]
    h = jnp.maximum(h, 0.0).astype(jnp.bfloat16)                 # ReLU

    h = jnp.dot(h, w2_ref[...], preferred_element_type=jnp.float32) + b2_ref[...]
    h = _gelu_tanh(h).astype(jnp.bfloat16)                       # GELU (tanh)

    h = jnp.dot(h, w3_ref[...], preferred_element_type=jnp.float32) + b3_ref[...]
    h = jnp.maximum(h, 0.0).astype(jnp.bfloat16)                 # ReLU

    h = jnp.dot(h, w4_ref[...], preferred_element_type=jnp.float32) + b4_ref[...]
    h = jnp.maximum(h, 0.0).astype(jnp.bfloat16)                 # ReLU (padded cols stay 0)

    h = jnp.dot(h, w5_ref[...], preferred_element_type=jnp.float32) + b5_ref[...]

    o_ref[...] = h.astype(o_ref.dtype)


def prepare_params(params):
    """One-time param prep: zero-pad the narrow hidden layer (64 -> 128) so
    every intermediate matmul is lane-dense, and cast weights to bf16.
    Numerically exact padding: ReLU(0)=0 keeps padded columns zero."""
    (w1, b1), (w2, b2), (w3, b3), (w4, b4), (w5, b5) = params

    h4 = w4.shape[1]                              # 64
    h4_p = _round_up(h4, _LANE)                   # 128
    w4p = jnp.pad(w4, ((0, 0), (0, h4_p - h4)))
    b4p = jnp.pad(b4, ((0, 0), (0, h4_p - h4)))
    w5p = jnp.pad(w5, ((0, h4_p - w5.shape[0]), (0, 0)))   # pad K rows only

    packed = [(w1, b1), (w2, b2), (w3, b3), (w4p, b4p), (w5p, b5)]
    return [(w.astype(jnp.bfloat16), b.astype(jnp.float32)) for w, b in packed]


def forward_neural_network(x, prepped_params, *, tile_b=2048):
    """x: (B, input_dim) f32. prepped_params: output of prepare_params()."""
    B, in_dim = x.shape
    out_dim = prepped_params[-1][0].shape[1]

    # --- batch tiling ---
    # Cap tb so the grid has >= 2 steps when possible (uses both TCs on v7x),
    # keep it a multiple of 8 sublanes, up to tile_b rows per tile.
    tb = min(tile_b, _round_up(-(-B // 2), _SUBLANE))
    tb = max(tb, _SUBLANE)
    Bp = _round_up(B, tb)
    xp = jnp.pad(x, ((0, Bp - B), (0, 0))) if Bp != B else x
    grid = (Bp // tb,)

    flat_inputs = [xp]
    in_specs = [pl.BlockSpec((tb, in_dim), lambda i: (i, 0))]
    for w, b in prepped_params:
        flat_inputs += [w, b]
        # Constant block index -> Pallas keeps these VMEM-resident across tiles
        # (no re-DMA when the block index does not change).
        in_specs += [pl.BlockSpec(w.shape, lambda i: (0, 0)),
                     pl.BlockSpec(b.shape, lambda i: (0, 0))]

    # --- advisory cost estimate for XLA's scheduler ---
    param_bytes = sum(int(w.size) * 2 + int(b.size) * 4 for w, b in prepped_params)
    flops = 2 * Bp * sum(int(w.shape[0]) * int(w.shape[1]) for w, _ in prepped_params)
    cost = pl.CostEstimate(
        flops=int(flops),
        transcendentals=int(Bp * 128),                 # tanh in the GELU layer
        bytes_accessed=int(xp.size * 4 + param_bytes + Bp * out_dim * 4),
    )

    out = pl.pallas_call(
        mlp_kernel,
        out_shape=jax.ShapeDtypeStruct((Bp, out_dim), jnp.float32),
        grid=grid,
        in_specs=in_specs,
        # Output at true width (block last dim == full array dim -> legal);
        # avoids the 128-wide padded writeback + external column slice.
        out_specs=pl.BlockSpec((tb, out_dim), lambda i: (i, 0)),
        compiler_params=pltpu.CompilerParams(
            dimension_semantics=("parallel",),
            # tb=2048 budget: x/out blocks (lane-padded, double-buffered) ~4 MiB,
            # bf16 weights ~0.25 MiB, intermediates a few MiB -> 32 MiB is ample
            # and within v7x's scoped default.
            vmem_limit_bytes=32 * 1024 * 1024,
        ),
        cost_estimate=cost,
    )(*flat_inputs)

    return out[:B] if Bp != B else out


def init_params(key, input_dim, output_dim):
    """Deterministic init mimicking nn.Linear's uniform(-1/sqrt(fan_in), ...)."""
    dims = [input_dim, 128, 128, 128, 64, output_dim]
    params = []
    for i in range(len(dims) - 1):
        fan_in, fan_out = dims[i], dims[i + 1]
        key, kw, kb = jax.random.split(key, 3)
        bound = 1.0 / math.sqrt(fan_in)
        # Stored as (in, out); kernel computes x @ W + b.
        w = jax.random.uniform(kw, (fan_in, fan_out), jnp.float32, -bound, bound)
        b = jax.random.uniform(kb, (1, fan_out), jnp.float32, -bound, bound)
        params.append((w, b))
    return params


def reference_forward(x, params):
    # Matches the PyTorch module (exact-erf GELU, f32).
    h = x
    acts = [jax.nn.relu,
            lambda v: jax.nn.gelu(v, approximate=False),
            jax.nn.relu,
            jax.nn.relu,
            lambda v: v]
    for (w, b), act in zip(params, acts):
        h = act(h @ w + b)
    return h


if __name__ == "__main__":
    key = jax.random.PRNGKey(0)
    input_dim, output_dim = 32, 16

    kx, kp, kx2 = jax.random.split(key, 3)
    params = init_params(kp, input_dim, output_dim)
    prepped = prepare_params(params)   # one-time: pad + bf16 cast

    # Tolerances loosened for bf16 MXU operands + tanh-approx GELU vs the
    # exact-erf f32 reference.
    ATOL = RTOL = 3e-2

    # Small batch (single-tile path).
    batch = 8
    x = jax.random.normal(kx, (batch, input_dim), jnp.float32)
    out = jax.block_until_ready(forward_neural_network(x, prepped))
    ref = reference_forward(x, params)
    assert out.shape == (batch, output_dim)
    assert jnp.allclose(out, ref, atol=ATOL, rtol=RTOL), "mismatch (small batch)"

    # Larger, non-multiple batch (multi-tile + row-padding path).
    batch2 = 300
    x2 = jax.random.normal(kx2, (batch2, input_dim), jnp.float32)
    out2 = jax.block_until_ready(forward_neural_network(x2, prepped, tile_b=128))
    ref2 = reference_forward(x2, params)
    assert out2.shape == (batch2, output_dim)
    assert jnp.allclose(out2, ref2, atol=ATOL, rtol=RTOL), "mismatch (tiled batch)"

    print("KERNEL_OK")
</pallas_src>

<mosaic_0001>
module attributes {stable_mosaic.version = 11 : i64} {
  func.func @mlp_kernel(%arg0: i32, %arg1: memref<8x32xf32, #tpu.memory_space<vmem>>, %arg2: memref<32x128xbf16, #tpu.memory_space<vmem>>, %arg3: memref<1x128xf32, #tpu.memory_space<vmem>>, %arg4: memref<128x128xbf16, #tpu.memory_space<vmem>>, %arg5: memref<1x128xf32, #tpu.memory_space<vmem>>, %arg6: memref<128x128xbf16, #tpu.memory_space<vmem>>, %arg7: memref<1x128xf32, #tpu.memory_space<vmem>>, %arg8: memref<128x128xbf16, #tpu.memory_space<vmem>>, %arg9: memref<1x128xf32, #tpu.memory_space<vmem>>, %arg10: memref<128x16xbf16, #tpu.memory_space<vmem>>, %arg11: memref<1x16xf32, #tpu.memory_space<vmem>>, %arg12: memref<8x16xf32, #tpu.memory_space<vmem>>) attributes {dimension_semantics = [#tpu.dimension_semantics<parallel>], iteration_bounds = array<i64: 1>, scalar_prefetch = 0 : i64, scratch_operands = 0 : i64, tpu.core_type = #tpu.core_type<tc>, window_params = [{transform_indices = @transform_0, window_bounds = array<i64: 8, 32>}, {pipeline_mode = #tpu.pipeline_mode<synchronous>, transform_indices = @transform_1, window_bounds = array<i64: 32, 128>}, {pipeline_mode = #tpu.pipeline_mode<synchronous>, transform_indices = @transform_2, window_bounds = array<i64: 1, 128>}, {pipeline_mode = #tpu.pipeline_mode<synchronous>, transform_indices = @transform_3, window_bounds = array<i64: 128, 128>}, {pipeline_mode = #tpu.pipeline_mode<synchronous>, transform_indices = @transform_4, window_bounds = array<i64: 1, 128>}, {pipeline_mode = #tpu.pipeline_mode<synchronous>, transform_indices = @transform_5, window_bounds = array<i64: 128, 128>}, {pipeline_mode = #tpu.pipeline_mode<synchronous>, transform_indices = @transform_6, window_bounds = array<i64: 1, 128>}, {pipeline_mode = #tpu.pipeline_mode<synchronous>, transform_indices = @transform_7, window_bounds = array<i64: 128, 128>}, {pipeline_mode = #tpu.pipeline_mode<synchronous>, transform_indices = @transform_8, window_bounds = array<i64: 1, 128>}, {pipeline_mode = #tpu.pipeline_mode<synchronous>, transform_indices = @transform_9, window_bounds = array<i64: 128, 16>}, {pipeline_mode = #tpu.pipeline_mode<synchronous>, transform_indices = @transform_10, window_bounds = array<i64: 1, 16>}, {transform_indices = @transform_11, window_bounds = array<i64: 8, 16>}]} {
    %c0 = arith.constant 0 : index
    %c0_0 = arith.constant 0 : index
    %0 = vector.load %arg1[%c0, %c0_0] : memref<8x32xf32, #tpu.memory_space<vmem>>, vector<8x32xf32>
    %1 = arith.truncf %0 : vector<8x32xf32> to vector<8x32xbf16>
    %c0_1 = arith.constant 0 : index
    %c0_2 = arith.constant 0 : index
    %2 = vector.load %arg2[%c0_1, %c0_2] : memref<32x128xbf16, #tpu.memory_space<vmem>>, vector<32x128xbf16>
    %cst = arith.constant dense<0.000000e+00> : vector<8x128xf32>
    %3 = tpu.matmul %1, %2, %cst {dimension_numbers = #tpu.dot_dimension_numbers<[1], [0], [0], [1], [0, 0, 1, 1], [], []>} : vector<8x32xbf16>, vector<32x128xbf16>, vector<8x128xf32> -> vector<8x128xf32>
    %c0_3 = arith.constant 0 : index
    %c0_4 = arith.constant 0 : index
    %4 = vector.load %arg3[%c0_3, %c0_4] : memref<1x128xf32, #tpu.memory_space<vmem>>, vector<1x128xf32>
    %5 = vector.broadcast %4 : vector<1x128xf32> to vector<8x128xf32>
    %6 = arith.addf %3, %5 : vector<8x128xf32>
    %cst_5 = arith.constant 0.000000e+00 : f32
    %7 = vector.broadcast %cst_5 : f32 to vector<8x128xf32>
    %8 = arith.maximumf %6, %7 : vector<8x128xf32>
    %9 = arith.truncf %8 : vector<8x128xf32> to vector<8x128xbf16>
    %c0_6 = arith.constant 0 : index
    %c0_7 = arith.constant 0 : index
    %10 = vector.load %arg4[%c0_6, %c0_7] : memref<128x128xbf16, #tpu.memory_space<vmem>>, vector<128x128xbf16>
    %cst_8 = arith.constant dense<0.000000e+00> : vector<8x128xf32>
    %11 = tpu.matmul %9, %10, %cst_8 {dimension_numbers = #tpu.dot_dimension_numbers<[1], [0], [0], [1], [0, 0, 1, 1], [], []>} : vector<8x128xbf16>, vector<128x128xbf16>, vector<8x128xf32> -> vector<8x128xf32>
    %c0_9 = arith.constant 0 : index
    %c0_10 = arith.constant 0 : index
    %12 = vector.load %arg5[%c0_9, %c0_10] : memref<1x128xf32, #tpu.memory_space<vmem>>, vector<1x128xf32>
    %13 = vector.broadcast %12 : vector<1x128xf32> to vector<8x128xf32>
    %14 = arith.addf %11, %13 : vector<8x128xf32>
    %cst_11 = arith.constant 5.000000e-01 : f32
    %15 = vector.broadcast %cst_11 : f32 to vector<8x128xf32>
    %16 = arith.mulf %15, %14 : vector<8x128xf32>
    %cst_12 = arith.constant 4.471500e-02 : f32
    %17 = vector.broadcast %cst_12 : f32 to vector<8x128xf32>
    %18 = arith.mulf %17, %14 : vector<8x128xf32>
    %19 = arith.mulf %18, %14 : vector<8x128xf32>
    %20 = arith.mulf %19, %14 : vector<8x128xf32>
    %21 = arith.addf %14, %20 : vector<8x128xf32>
    %cst_13 = arith.constant 0.797884583 : f32
    %22 = vector.broadcast %cst_13 : f32 to vector<8x128xf32>
    %23 = arith.mulf %22, %21 : vector<8x128xf32>
    %24 = math.tanh %23 : vector<8x128xf32>
    %cst_14 = arith.constant 1.000000e+00 : f32
    %25 = vector.broadcast %cst_14 : f32 to vector<8x128xf32>
    %26 = arith.addf %25, %24 : vector<8x128xf32>
    %27 = arith.mulf %16, %26 : vector<8x128xf32>
    %28 = arith.truncf %27 : vector<8x128xf32> to vector<8x128xbf16>
    %c0_15 = arith.constant 0 : index
    %c0_16 = arith.constant 0 : index
    %29 = vector.load %arg6[%c0_15, %c0_16] : memref<128x128xbf16, #tpu.memory_space<vmem>>, vector<128x128xbf16>
    %cst_17 = arith.constant dense<0.000000e+00> : vector<8x128xf32>
    %30 = tpu.matmul %28, %29, %cst_17 {dimension_numbers = #tpu.dot_dimension_numbers<[1], [0], [0], [1], [0, 0, 1, 1], [], []>} : vector<8x128xbf16>, vector<128x128xbf16>, vector<8x128xf32> -> vector<8x128xf32>
    %c0_18 = arith.constant 0 : index
    %c0_19 = arith.constant 0 : index
    %31 = vector.load %arg7[%c0_18, %c0_19] : memref<1x128xf32, #tpu.memory_space<vmem>>, vector<1x128xf32>
    %32 = vector.broadcast %31 : vector<1x128xf32> to vector<8x128xf32>
    %33 = arith.addf %30, %32 : vector<8x128xf32>
    %cst_20 = arith.constant 0.000000e+00 : f32
    %34 = vector.broadcast %cst_20 : f32 to vector<8x128xf32>
    %35 = arith.maximumf %33, %34 : vector<8x128xf32>
    %36 = arith.truncf %35 : vector<8x128xf32> to vector<8x128xbf16>
    %c0_21 = arith.constant 0 : index
    %c0_22 = arith.constant 0 : index
    %37 = vector.load %arg8[%c0_21, %c0_22] : memref<128x128xbf16, #tpu.memory_space<vmem>>, vector<128x128xbf16>
    %cst_23 = arith.constant dense<0.000000e+00> : vector<8x128xf32>
    %38 = tpu.matmul %36, %37, %cst_23 {dimension_numbers = #tpu.dot_dimension_numbers<[1], [0], [0], [1], [0, 0, 1, 1], [], []>} : vector<8x128xbf16>, vector<128x128xbf16>, vector<8x128xf32> -> vector<8x128xf32>
    %c0_24 = arith.constant 0 : index
    %c0_25 = arith.constant 0 : index
    %39 = vector.load %arg9[%c0_24, %c0_25] : memref<1x128xf32, #tpu.memory_space<vmem>>, vector<1x128xf32>
    %40 = vector.broadcast %39 : vector<1x128xf32> to vector<8x128xf32>
    %41 = arith.addf %38, %40 : vector<8x128xf32>
    %cst_26 = arith.constant 0.000000e+00 : f32
    %42 = vector.broadcast %cst_26 : f32 to vector<8x128xf32>
    %43 = arith.maximumf %41, %42 : vector<8x128xf32>
    %44 = arith.truncf %43 : vector<8x128xf32> to vector<8x128xbf16>
    %c0_27 = arith.constant 0 : index
    %c0_28 = arith.constant 0 : index
    %45 = vector.load %arg10[%c0_27, %c0_28] : memref<128x16xbf16, #tpu.memory_space<vmem>>, vector<128x16xbf16>
    %cst_29 = arith.constant dense<0.000000e+00> : vector<8x16xf32>
    %46 = tpu.matmul %44, %45, %cst_29 {dimension_numbers = #tpu.dot_dimension_numbers<[1], [0], [0], [1], [0, 0, 1, 1], [], []>} : vector<8x128xbf16>, vector<128x16xbf16>, vector<8x16xf32> -> vector<8x16xf32>
    %c0_30 = arith.constant 0 : index
    %c0_31 = arith.constant 0 : index
    %47 = vector.load %arg11[%c0_30, %c0_31] : memref<1x16xf32, #tpu.memory_space<vmem>>, vector<1x16xf32>
    %48 = vector.broadcast %47 : vector<1x16xf32> to vector<8x16xf32>
    %49 = arith.addf %46, %48 : vector<8x16xf32>
    %c0_32 = arith.constant 0 : index
    %c0_33 = arith.constant 0 : index
    %50 = vector.load %arg12[%c0_32, %c0_33] : memref<8x16xf32, #tpu.memory_space<vmem>>, vector<8x16xf32>
    tpu.vector_store %arg12[%c0_32, %c0_33], %49 {strides = array<i32>} : memref<8x16xf32, #tpu.memory_space<vmem>>, vector<8x16xf32>,
    return
  }
  func.func @transform_0(%arg0: i32) -> (i32, i32) {
    %c0_i32 = arith.constant 0 : i32
    %c0_i32_0 = arith.constant 0 : i32
    return %arg0, %c0_i32 : i32, i32
  }
  func.func @transform_1(%arg0: i32) -> (i32, i32) {
    %c0_i32 = arith.constant 0 : i32
    %c0_i32_0 = arith.constant 0 : i32
    %c0_i32_1 = arith.constant 0 : i32
    return %c0_i32, %c0_i32_0 : i32, i32
  }
  func.func @transform_2(%arg0: i32) -> (i32, i32) {
    %c0_i32 = arith.constant 0 : i32
    %c0_i32_0 = arith.constant 0 : i32
    %c0_i32_1 = arith.constant 0 : i32
    return %c0_i32, %c0_i32_0 : i32, i32
  }
  func.func @transform_3(%arg0: i32) -> (i32, i32) {
    %c0_i32 = arith.constant 0 : i32
    %c0_i32_0 = arith.constant 0 : i32
    %c0_i32_1 = arith.constant 0 : i32
    return %c0_i32, %c0_i32_0 : i32, i32
  }
  func.func @transform_4(%arg0: i32) -> (i32, i32) {
    %c0_i32 = arith.constant 0 : i32
    %c0_i32_0 = arith.constant 0 : i32
    %c0_i32_1 = arith.constant 0 : i32
    return %c0_i32, %c0_i32_0 : i32, i32
  }
  func.func @transform_5(%arg0: i32) -> (i32, i32) {
    %c0_i32 = arith.constant 0 : i32
    %c0_i32_0 = arith.constant 0 : i32
    %c0_i32_1 = arith.constant 0 : i32
    return %c0_i32, %c0_i32_0 : i32, i32
  }
  func.func @transform_6(%arg0: i32) -> (i32, i32) {
    %c0_i32 = arith.constant 0 : i32
    %c0_i32_0 = arith.constant 0 : i32
    %c0_i32_1 = arith.constant 0 : i32
    return %c0_i32, %c0_i32_0 : i32, i32
  }
  func.func @transform_7(%arg0: i32) -> (i32, i32) {
    %c0_i32 = arith.constant 0 : i32
    %c0_i32_0 = arith.constant 0 : i32
    %c0_i32_1 = arith.constant 0 : i32
    return %c0_i32, %c0_i32_0 : i32, i32
  }
  func.func @transform_8(%arg0: i32) -> (i32, i32) {
    %c0_i32 = arith.constant 0 : i32
    %c0_i32_0 = arith.constant 0 : i32
    %c0_i32_1 = arith.constant 0 : i32
    return %c0_i32, %c0_i32_0 : i32, i32
  }
  func.func @transform_9(%arg0: i32) -> (i32, i32) {
    %c0_i32 = arith.constant 0 : i32
    %c0_i32_0 = arith.constant 0 : i32
    %c0_i32_1 = arith.constant 0 : i32
    return %c0_i32, %c0_i32_0 : i32, i32
  }
  func.func @transform_10(%arg0: i32) -> (i32, i32) {
    %c0_i32 = arith.constant 0 : i32
    %c0_i32_0 = arith.constant 0 : i32
    %c0_i32_1 = arith.constant 0 : i32
    return %c0_i32, %c0_i32_0 : i32, i32
  }
  func.func @transform_11(%arg0: i32) -> (i32, i32) {
    %c0_i32 = arith.constant 0 : i32
    %c0_i32_0 = arith.constant 0 : i32
    return %arg0, %c0_i32 : i32, i32
  }
}

</mosaic_0001>

<llo_original>
// kernel: tpu_custom_call.1
$region0: #{tpu_custom_call.1}
  #allocation0 [shape = 'u32[]', space=smem, size = 0x4, offset = 0x4, fixed_abs, tag = 'smem constant byte address 0x4 - core index']
  #allocation1 [shape = 'u32[144,128]{1,0:T(1,128)}', space=vmem, size = 0x12000, scoped, tag = 'internal scratch']
  %s0 = inlined_call_operand.hbm [shape: f32[8,32], index: 0, kind: input, shape index: {}]
  %s1 = inlined_call_operand.vmem [shape: bf16[32,128], index: 1, kind: input, shape index: {}]
  %s2 = inlined_call_operand.vmem [shape: f32[1,128], index: 2, kind: input, shape index: {}]
  %s3 = inlined_call_operand.vmem [shape: bf16[128,128], index: 3, kind: input, shape index: {}]
  %s4 = inlined_call_operand.vmem [shape: f32[1,128], index: 4, kind: input, shape index: {}]
  %s5 = inlined_call_operand.hbm [shape: bf16[128,128], index: 5, kind: input, shape index: {}]
  %s6 = inlined_call_operand.vmem [shape: f32[1,128], index: 6, kind: input, shape index: {}]
  %s7 = inlined_call_operand.hbm [shape: bf16[128,128], index: 7, kind: input, shape index: {}]
  %s8 = inlined_call_operand.vmem [shape: f32[1,128], index: 8, kind: input, shape index: {}]
  %s9 = inlined_call_operand.vmem [shape: bf16[128,16], index: 9, kind: input, shape index: {}]
  %s10 = inlined_call_operand.vmem [shape: f32[1,16], index: 10, kind: input, shape index: {}]
  %s11 = inlined_call_operand.hbm [shape: f32[8,16], index: 11, kind: output, shape index: {}]
  %s12 = sld [smem:[#allocation0]]
  $region66: #{tpu_custom_call.1} parent=0
    _
  %s14 = ssub.s32 1, %s12
  %s15 = scalar_select 0, %s14, %s12
  $region1: #{tpu_custom_call.1} parent=0
    #allocation2 [shape = 'u8[4096]{0}', space=vmem, size = 0x1000, scoped, tag = 'input window, operand 0, single buffered']
    #allocation3 [shape = 's32[1]{0}', space=sflag, size = 0x4, scoped, tag = 'scoped memory for tpu_custom_call.1']
    #allocation4 [shape = 's32[1]{0}', space=sflag, size = 0x4, scoped, tag = 'scoped memory for tpu_custom_call.1']
    #allocation5 [shape = 'u8[32768]{0}', space=vmem, size = 0x8000, scoped, tag = 'input window, operand 5, single buffered']
    #allocation6 [shape = 's32[1]{0}', space=sflag, size = 0x4, scoped, tag = 'scoped memory for tpu_custom_call.1']
    #allocation7 [shape = 'u8[32768]{0}', space=vmem, size = 0x8000, scoped, tag = 'input window, operand 7, single buffered']
    #allocation8 [shape = 'u8[4096]{0}', space=vmem, size = 0x1000, scoped, tag = 'output window, operand 0, single buffered']
    %16 = vsyncpa [#allocation3], 0
    %17 = vsyncpa [#allocation6], 0
    %18 = vsyncpa [#allocation4], 0
    // Predicated region
    $region2: #{tpu_custom_call.1} parent=1 // pred_check
      _
    $region3: #{tpu_custom_call.1} parent=1 // pred_check_branch
      %20 = sbr.rel (0) target = $region5
    $region4: #{tpu_custom_call.1} parent=1 // pred_region
      %s22 = ssub.s32 128, 128
      %23 = vsyncadd [#allocation3], %s22
      %s25 = sshll.u32 [#allocation2], 4
      %s26 = int_to_ptr.vmem [resolvable:$true] %s25
      %28 = dma.hbm_to_vmem [thread:$0]  %s0, 128, %s26, [#allocation3]
    $region5: #{tpu_custom_call.1} parent=1 // pred_fallthru
      _
    // Predicated region
    $region6: #{tpu_custom_call.1} parent=1 // pred_check
      _
    $region7: #{tpu_custom_call.1} parent=1 // pred_check_branch
      %30 = sbr.rel (0) target = $region9
    $region8: #{tpu_custom_call.1} parent=1 // pred_region
      _
    $region9: #{tpu_custom_call.1} parent=1 // pred_fallthru
      _
    // Predicated region
    $region10: #{tpu_custom_call.1} parent=1 // pred_check
      _
    $region11: #{tpu_custom_call.1} parent=1 // pred_check_branch
      %32 = sbr.rel (0) target = $region13
    $region12: #{tpu_custom_call.1} parent=1 // pred_region
      _
    $region13: #{tpu_custom_call.1} parent=1 // pred_fallthru
      _
    // Predicated region
    $region14: #{tpu_custom_call.1} parent=1 // pred_check
      _
    $region15: #{tpu_custom_call.1} parent=1 // pred_check_branch
      %34 = sbr.rel (0) target = $region17
    $region16: #{tpu_custom_call.1} parent=1 // pred_region
      _
    $region17: #{tpu_custom_call.1} parent=1 // pred_fallthru
      _
    // Predicated region
    $region18: #{tpu_custom_call.1} parent=1 // pred_check
      _
    $region19: #{tpu_custom_call.1} parent=1 // pred_check_branch
      %36 = sbr.rel (0) target = $region21
    $region20: #{tpu_custom_call.1} parent=1 // pred_region
      _
    $region21: #{tpu_custom_call.1} parent=1 // pred_fallthru
      _
    // Predicated region
    $region22: #{tpu_custom_call.1} parent=1 // pred_check
      _
    $region23: #{tpu_custom_call.1} parent=1 // pred_check_branch
      %38 = sbr.rel (0) target = $region25
    $region24: #{tpu_custom_call.1} parent=1 // pred_region
      %s40 = ssub.s32 1024, 1024
      %41 = vsyncadd [#allocation6], %s40
      %s42 = sshll.u32 [#allocation5], 4
      %s43 = int_to_ptr.vmem [resolvable:$true] %s42
      %48 = dma.hbm_to_vmem [thread:$0]  %s5, 1024, %s43, [#allocation6], 64, 64, 4
    $region25: #{tpu_custom_call.1} parent=1 // pred_fallthru
      _
    // Predicated region
    $region26: #{tpu_custom_call.1} parent=1 // pred_check
      _
    $region27: #{tpu_custom_call.1} parent=1 // pred_check_branch
      %50 = sbr.rel (0) target = $region29
    $region28: #{tpu_custom_call.1} parent=1 // pred_region
      _
    $region29: #{tpu_custom_call.1} parent=1 // pred_fallthru
      _
    // Predicated region
    $region30: #{tpu_custom_call.1} parent=1 // pred_check
      _
    $region31: #{tpu_custom_call.1} parent=1 // pred_check_branch
      %52 = sbr.rel (0) target = $region33
    $region32: #{tpu_custom_call.1} parent=1 // pred_region
      %s54 = ssub.s32 1024, 1024
      %55 = vsyncadd [#allocation6], %s54
      %s56 = sshll.u32 [#allocation7], 4
      %s57 = int_to_ptr.vmem [resolvable:$true] %s56
      %62 = dma.hbm_to_vmem [thread:$0]  %s7, 1024, %s57, [#allocation6], 64, 64, 4
    $region33: #{tpu_custom_call.1} parent=1 // pred_fallthru
      _
    // Predicated region
    $region34: #{tpu_custom_call.1} parent=1 // pred_check
      _
    $region35: #{tpu_custom_call.1} parent=1 // pred_check_branch
      %64 = sbr.rel (0) target = $region37
    $region36: #{tpu_custom_call.1} parent=1 // pred_region
      _
    $region37: #{tpu_custom_call.1} parent=1 // pred_fallthru
      _
    // Predicated region
    $region38: #{tpu_custom_call.1} parent=1 // pred_check
      _
    $region39: #{tpu_custom_call.1} parent=1 // pred_check_branch
      %66 = sbr.rel (0) target = $region41
    $region40: #{tpu_custom_call.1} parent=1 // pred_region
      _
    $region41: #{tpu_custom_call.1} parent=1 // pred_fallthru
      _
    // Predicated region
    $region42: #{tpu_custom_call.1} parent=1 // pred_check
      _
    $region43: #{tpu_custom_call.1} parent=1 // pred_check_branch
      %68 = sbr.rel (0) target = $region45
    $region44: #{tpu_custom_call.1} parent=1 // pred_region
      _
    $region45: #{tpu_custom_call.1} parent=1 // pred_fallthru
      _
    // Predicated region
    $region46: #{tpu_custom_call.1} parent=1 // pred_check
      _
    $region47: #{tpu_custom_call.1} parent=1 // pred_check_branch
      %70 = sbr.rel (0) target = $region49
    $region48: #{tpu_custom_call.1} parent=1 // pred_region
      %71 = dma.done [#allocation3], 128
    $region49: #{tpu_custom_call.1} parent=1 // pred_fallthru
      _
    // Predicated region
    $region50: #{tpu_custom_call.1} parent=1 // pred_check
      _
    $region51: #{tpu_custom_call.1} parent=1 // pred_check_branch
      %73 = sbr.rel (0) target = $region53
    $region52: #{tpu_custom_call.1} parent=1 // pred_region
      %74 = dma.done [#allocation6], 1024
    $region53: #{tpu_custom_call.1} parent=1 // pred_fallthru
      _
    // Predicated region
    $region54: #{tpu_custom_call.1} parent=1 // pred_check
      _
    $region55: #{tpu_custom_call.1} parent=1 // pred_check_branch
      %76 = sbr.rel (0) target = $region57
    $region56: #{tpu_custom_call.1} parent=1 // pred_region
      %77 = dma.done [#allocation6], 1024
    $region57: #{tpu_custom_call.1} parent=1 // pred_fallthru
      _
    %v79 = vld [vmem:[#allocation2] sm:$0xff]
    %v80 = vpack.c.bf16 %v79, %v79
    %v81 = vld [vmem:[%s1] sm:$0xf]
    %v82 = vld [vmem:[%s1 + $0x4] sm:$0xf]
    %v83 = vld [vmem:[%s1 + $0x8] sm:$0xf]
    %v84 = vld [vmem:[%s1 + $0xc] sm:$0xf]
    %v85 = vld [vmem:[%s2] sm:$0x1]
    %v87 = vlaneseq
    %v88 = vshrl.u32 %v87, 7
    %v89 = vsub.s32 0, %v88
    %v90 = vrot.slane %v85, %v89
    %v96 = vunpack.c.l.b16 %v81
    %v97 = vunpack.c.l.b16 %v82
    %v98 = vunpack.c.l.b16 %v83
    %v99 = vunpack.c.l.b16 %v84
    %v100 = vpack.c.b16 %v97, %v96
    %v101 = vpack.c.b16 %v99, %v98
    %vm104 = vcmask 261120
    %v106 = vsel %vm104, %v80, 0
    %108 = vmatprep.subr.bf16.mxu0 0
    %109 = vmatpush1.bf16.msra.mxu0 %v100
    %110 = vmatprep.subr.bf16.mxu0 0
    %111 = vmatpush1.bf16.msra.mxu0 %v101
    %112 = vmatprep.subr.bf16.mxu0 0
    %113 = vmatpush1.bf16.msra.mxu0 0
    %114 = vmatprep.subr.bf16.mxu0 0
    %115 = vmatpush1.bf16.msra.mxu0 0
    %116 = vmatprep.subr.bf16.mxu0 0
    %117 = vmatpush1.bf16.msra.mxu0 0
    %118 = vmatprep.subr.bf16.mxu0 0
    %119 = vmatpush1.bf16.msra.mxu0 0
    %120 = vmatprep.subr.bf16.mxu0 0
    %121 = vmatpush1.bf16.msra.mxu0 0
    %122 = vmatprep.subr.bf16.mxu0 0
    %123 = vmatpush1.bf16.msra.mxu0 0
    %124 = vmatprep.subr.bf16.mxu0 0
    %125 = vmatpush1.bf16.msra.mxu0 0
    %126 = vmatprep.subr.bf16.mxu0 0
    %127 = vmatpush1.bf16.msra.mxu0 0
    %128 = vmatprep.subr.bf16.mxu0 0
    %129 = vmatpush1.bf16.msra.mxu0 0
    %130 = vmatprep.subr.bf16.mxu0 0
    %131 = vmatpush1.bf16.msra.mxu0 0
    %132 = vmatprep.subr.bf16.mxu0 0
    %133 = vmatpush1.bf16.msra.mxu0 0
    %134 = vmatprep.subr.bf16.mxu0 0
    %135 = vmatpush1.bf16.msra.mxu0 0
    %136 = vmatprep.subr.bf16.mxu0 0
    %137 = vmatpush1.bf16.msra.mxu0 0
    %138 = vmatprep.subr.bf16.mxu0 0
    %139 = vmatpush1.bf16.msra.mxu0 0
    %140 = vmatprep.mubr.bf16.mxu0 0
    %141 = vmatmul.mubr.bf16.gmra.mrb[0].mxu0 %v106
    %v142 = vpop.f32.mrb[0].mxu0
    %v143 = vadd.f32 %v90, %v142
    %v144 = vpop.f32.mrb[0].mxu0
    %v145 = vpop.f32.mrb[0].mxu0
    %v146 = vpop.f32.mrb[0].mxu0
    %147 = vdwg.mxu0
    %v148 = vmax.f32 %v143, 0.0
    %v149 = vpack.c.bf16 %v148, %v148
    %v150 = vld [vmem:[%s3] sm:$0xf]
    %v151 = vld [vmem:[%s3 + $0x4] sm:$0xf]
    %v152 = vld [vmem:[%s3 + $0x8] sm:$0xf]
    %v153 = vld [vmem:[%s3 + $0xc] sm:$0xf]
    %v154 = vld [vmem:[%s3 + $0x10] sm:$0xf]
    %v155 = vld [vmem:[%s3 + $0x14] sm:$0xf]
    %v156 = vld [vmem:[%s3 + $0x18] sm:$0xf]
    %v157 = vld [vmem:[%s3 + $0x1c] sm:$0xf]
    %v158 = vld [vmem:[%s3 + $0x20] sm:$0xf]
    %v159 = vld [vmem:[%s3 + $0x24] sm:$0xf]
    %v160 = vld [vmem:[%s3 + $0x28] sm:$0xf]
    %v161 = vld [vmem:[%s3 + $0x2c] sm:$0xf]
    %v162 = vld [vmem:[%s3 + $0x30] sm:$0xf]
    %v163 = vld [vmem:[%s3 + $0x34] sm:$0xf]
    %v164 = vld [vmem:[%s3 + $0x38] sm:$0xf]
    %v165 = vld [vmem:[%s3 + $0x3c] sm:$0xf]
    %v166 = vld [vmem:[%s4] sm:$0x1]
    %v168 = vlaneseq
    %v169 = vshrl.u32 %v168, 7
    %v170 = vsub.s32 0, %v169
    %v171 = vrot.slane %v166, %v170
    %v189 = vunpack.c.l.b16 %v150
    %v190 = vunpack.c.l.b16 %v151
    %v191 = vunpack.c.l.b16 %v152
    %v192 = vunpack.c.l.b16 %v153
    %v193 = vunpack.c.l.b16 %v154
    %v194 = vunpack.c.l.b16 %v155
    %v195 = vunpack.c.l.b16 %v156
    %v196 = vunpack.c.l.b16 %v157
    %v197 = vunpack.c.l.b16 %v158
    %v198 = vunpack.c.l.b16 %v159
    %v199 = vunpack.c.l.b16 %v160
    %v200 = vunpack.c.l.b16 %v161
    %v201 = vunpack.c.l.b16 %v162
    %v202 = vunpack.c.l.b16 %v163
    %v203 = vunpack.c.l.b16 %v164
    %v204 = vunpack.c.l.b16 %v165
    %v205 = vpack.c.b16 %v190, %v189
    %v206 = vpack.c.b16 %v192, %v191
    %v207 = vpack.c.b16 %v194, %v193
    %v208 = vpack.c.b16 %v196, %v195
    %v209 = vpack.c.b16 %v198, %v197
    %v210 = vpack.c.b16 %v200, %v199
    %v211 = vpack.c.b16 %v202, %v201
    %v212 = vpack.c.b16 %v204, %v203
    %221 = vmatprep.subr.bf16.mxu0 0
    %222 = vmatpush1.bf16.msra.mxu0 %v205
    %223 = vmatprep.subr.bf16.mxu0 0
    %224 = vmatpush1.bf16.msra.mxu0 %v206
    %225 = vmatprep.subr.bf16.mxu0 0
    %226 = vmatpush1.bf16.msra.mxu0 %v207
    %227 = vmatprep.subr.bf16.mxu0 0
    %228 = vmatpush1.bf16.msra.mxu0 %v208
    %229 = vmatprep.subr.bf16.mxu0 0
    %230 = vmatpush1.bf16.msra.mxu0 %v209
    %231 = vmatprep.subr.bf16.mxu0 0
    %232 = vmatpush1.bf16.msra.mxu0 %v210
    %233 = vmatprep.subr.bf16.mxu0 0
    %234 = vmatpush1.bf16.msra.mxu0 %v211
    %235 = vmatprep.subr.bf16.mxu0 0
    %236 = vmatpush1.bf16.msra.mxu0 %v212
    %237 = vmatprep.subr.bf16.mxu0 0
    %238 = vmatpush1.bf16.msra.mxu0 0
    %239 = vmatprep.subr.bf16.mxu0 0
    %240 = vmatpush1.bf16.msra.mxu0 0
    %241 = vmatprep.subr.bf16.mxu0 0
    %242 = vmatpush1.bf16.msra.mxu0 0
    %243 = vmatprep.subr.bf16.mxu0 0
    %244 = vmatpush1.bf16.msra.mxu0 0
    %245 = vmatprep.subr.bf16.mxu0 0
    %246 = vmatpush1.bf16.msra.mxu0 0
    %247 = vmatprep.subr.bf16.mxu0 0
    %248 = vmatpush1.bf16.msra.mxu0 0
    %249 = vmatprep.subr.bf16.mxu0 0
    %250 = vmatpush1.bf16.msra.mxu0 0
    %251 = vmatprep.subr.bf16.mxu0 0
    %252 = vmatpush1.bf16.msra.mxu0 0
    %253 = vmatprep.mubr.bf16.mxu0 0
    %254 = vmatmul.mubr.bf16.gmra.mrb[0].mxu0 %v149
    %v255 = vpop.f32.mrb[0].mxu0
    %v256 = vadd.f32 %v171, %v255
    %v257 = vpop.f32.mrb[0].mxu0
    %v258 = vpop.f32.mrb[0].mxu0
    %v259 = vpop.f32.mrb[0].mxu0
    %260 = vdwg.mxu0
    %v261 = vmul.f32 %v256, 0.5
    %v262 = vmul.f32 %v256, 0.044715
    %v263 = vmul.f32 %v262, %v256
    %v264 = vmul.f32 %v263, %v256
    %v265 = vadd.f32 %v256, %v264
    %v266 = vmul.f32 %v265, 0.7978846
    %v267 = vtanh.pop %v266
    %v268 = vadd.f32 %v267, 1.0
    %v269 = vmul.f32 %v261, %v268
    %v270 = vpack.c.bf16 %v269, %v269
    %v271 = vld [vmem:[#allocation5] sm:$0xf]
    %v272 = vld [vmem:[#allocation5 + $0x4] sm:$0xf]
    %v273 = vld [vmem:[#allocation5 + $0x8] sm:$0xf]
    %v274 = vld [vmem:[#allocation5 + $0xc] sm:$0xf]
    %v275 = vld [vmem:[#allocation5 + $0x10] sm:$0xf]
    %v276 = vld [vmem:[#allocation5 + $0x14] sm:$0xf]
    %v277 = vld [vmem:[#allocation5 + $0x18] sm:$0xf]
    %v278 = vld [vmem:[#allocation5 + $0x1c] sm:$0xf]
    %v279 = vld [vmem:[#allocation5 + $0x20] sm:$0xf]
    %v280 = vld [vmem:[#allocation5 + $0x24] sm:$0xf]
    %v281 = vld [vmem:[#allocation5 + $0x28] sm:$0xf]
    %v282 = vld [vmem:[#allocation5 + $0x2c] sm:$0xf]
    %v283 = vld [vmem:[#allocation5 + $0x30] sm:$0xf]
    %v284 = vld [vmem:[#allocation5 + $0x34] sm:$0xf]
    %v285 = vld [vmem:[#allocation5 + $0x38] sm:$0xf]
    %v286 = vld [vmem:[#allocation5 + $0x3c] sm:$0xf]
    %v287 = vld [vmem:[%s6] sm:$0x1]
    %v289 = vlaneseq
    %v290 = vshrl.u32 %v289, 7
    %v291 = vsub.s32 0, %v290
    %v292 = vrot.slane %v287, %v291
    %v310 = vunpack.c.l.b16 %v271
    %v311 = vunpack.c.l.b16 %v272
    %v312 = vunpack.c.l.b16 %v273
    %v313 = vunpack.c.l.b16 %v274
    %v314 = vunpack.c.l.b16 %v275
    %v315 = vunpack.c.l.b16 %v276
    %v316 = vunpack.c.l.b16 %v277
    %v317 = vunpack.c.l.b16 %v278
    %v318 = vunpack.c.l.b16 %v279
    %v319 = vunpack.c.l.b16 %v280
    %v320 = vunpack.c.l.b16 %v281
    %v321 = vunpack.c.l.b16 %v282
    %v322 = vunpack.c.l.b16 %v283
    %v323 = vunpack.c.l.b16 %v284
    %v324 = vunpack.c.l.b16 %v285
    %v325 = vunpack.c.l.b16 %v286
    %v326 = vpack.c.b16 %v311, %v310
    %v327 = vpack.c.b16 %v313, %v312
    %v328 = vpack.c.b16 %v315, %v314
    %v329 = vpack.c.b16 %v317, %v316
    %v330 = vpack.c.b16 %v319, %v318
    %v331 = vpack.c.b16 %v321, %v320
    %v332 = vpack.c.b16 %v323, %v322
    %v333 = vpack.c.b16 %v325, %v324
    %342 = vmatprep.subr.bf16.mxu0 0
    %343 = vmatpush1.bf16.msra.mxu0 %v326
    %344 = vmatprep.subr.bf16.mxu0 0
    %345 = vmatpush1.bf16.msra.mxu0 %v327
    %346 = vmatprep.subr.bf16.mxu0 0
    %347 = vmatpush1.bf16.msra.mxu0 %v328
    %348 = vmatprep.subr.bf16.mxu0 0
    %349 = vmatpush1.bf16.msra.mxu0 %v329
    %350 = vmatprep.subr.bf16.mxu0 0
    %351 = vmatpush1.bf16.msra.mxu0 %v330
    %352 = vmatprep.subr.bf16.mxu0 0
    %353 = vmatpush1.bf16.msra.mxu0 %v331
    %354 = vmatprep.subr.bf16.mxu0 0
    %355 = vmatpush1.bf16.msra.mxu0 %v332
    %356 = vmatprep.subr.bf16.mxu0 0
    %357 = vmatpush1.bf16.msra.mxu0 %v333
    %358 = vmatprep.subr.bf16.mxu0 0
    %359 = vmatpush1.bf16.msra.mxu0 0
    %360 = vmatprep.subr.bf16.mxu0 0
    %361 = vmatpush1.bf16.msra.mxu0 0
    %362 = vmatprep.subr.bf16.mxu0 0
    %363 = vmatpush1.bf16.msra.mxu0 0
    %364 = vmatprep.subr.bf16.mxu0 0
    %365 = vmatpush1.bf16.msra.mxu0 0
    %366 = vmatprep.subr.bf16.mxu0 0
    %367 = vmatpush1.bf16.msra.mxu0 0
    %368 = vmatprep.subr.bf16.mxu0 0
    %369 = vmatpush1.bf16.msra.mxu0 0
    %370 = vmatprep.subr.bf16.mxu0 0
    %371 = vmatpush1.bf16.msra.mxu0 0
    %372 = vmatprep.subr.bf16.mxu0 0
    %373 = vmatpush1.bf16.msra.mxu0 0
    %374 = vmatprep.mubr.bf16.mxu0 0
    %375 = vmatmul.mubr.bf16.gmra.mrb[0].mxu0 %v270
    %v376 = vpop.f32.mrb[0].mxu0
    %v377 = vadd.f32 %v292, %v376
    %v378 = vpop.f32.mrb[0].mxu0
    %v379 = vpop.f32.mrb[0].mxu0
    %v380 = vpop.f32.mrb[0].mxu0
    %381 = vdwg.mxu0
    %v382 = vmax.f32 %v377, 0.0
    %v383 = vpack.c.bf16 %v382, %v382
    %v384 = vld [vmem:[#allocation7] sm:$0xf]
    %v385 = vld [vmem:[#allocation7 + $0x4] sm:$0xf]
    %v386 = vld [vmem:[#allocation7 + $0x8] sm:$0xf]
    %v387 = vld [vmem:[#allocation7 + $0xc] sm:$0xf]
    %v388 = vld [vmem:[#allocation7 + $0x10] sm:$0xf]
    %v389 = vld [vmem:[#allocation7 + $0x14] sm:$0xf]
    %v390 = vld [vmem:[#allocation7 + $0x18] sm:$0xf]
    %v391 = vld [vmem:[#allocation7 + $0x1c] sm:$0xf]
    %v392 = vld [vmem:[#allocation7 + $0x20] sm:$0xf]
    %v393 = vld [vmem:[#allocation7 + $0x24] sm:$0xf]
    %v394 = vld [vmem:[#allocation7 + $0x28] sm:$0xf]
    %v395 = vld [vmem:[#allocation7 + $0x2c] sm:$0xf]
    %v396 = vld [vmem:[#allocation7 + $0x30] sm:$0xf]
    %v397 = vld [vmem:[#allocation7 + $0x34] sm:$0xf]
    %v398 = vld [vmem:[#allocation7 + $0x38] sm:$0xf]
    %v399 = vld [vmem:[#allocation7 + $0x3c] sm:$0xf]
    %v400 = vld [vmem:[%s8] sm:$0x1]
    %v402 = vlaneseq
    %v403 = vshrl.u32 %v402, 7
    %v404 = vsub.s32 0, %v403
    %v405 = vrot.slane %v400, %v404
    %v423 = vunpack.c.l.b16 %v384
    %v424 = vunpack.c.l.b16 %v385
    %v425 = vunpack.c.l.b16 %v386
    %v426 = vunpack.c.l.b16 %v387
    %v427 = vunpack.c.l.b16 %v388
    %v428 = vunpack.c.l.b16 %v389
    %v429 = vunpack.c.l.b16 %v390
    %v430 = vunpack.c.l.b16 %v391
    %v431 = vunpack.c.l.b16 %v392
    %v432 = vunpack.c.l.b16 %v393
    %v433 = vunpack.c.l.b16 %v394
    %v434 = vunpack.c.l.b16 %v395
    %v435 = vunpack.c.l.b16 %v396
    %v436 = vunpack.c.l.b16 %v397
    %v437 = vunpack.c.l.b16 %v398
    %v438 = vunpack.c.l.b16 %v399
    %v439 = vpack.c.b16 %v424, %v423
    %v440 = vpack.c.b16 %v426, %v425
    %v441 = vpack.c.b16 %v428, %v427
    %v442 = vpack.c.b16 %v430, %v429
    %v443 = vpack.c.b16 %v432, %v431
    %v444 = vpack.c.b16 %v434, %v433
    %v445 = vpack.c.b16 %v436, %v435
    %v446 = vpack.c.b16 %v438, %v437
    %455 = vmatprep.subr.bf16.mxu0 0
    %456 = vmatpush1.bf16.msra.mxu0 %v439
    %457 = vmatprep.subr.bf16.mxu0 0
    %458 = vmatpush1.bf16.msra.mxu0 %v440
    %459 = vmatprep.subr.bf16.mxu0 0
    %460 = vmatpush1.bf16.msra.mxu0 %v441
    %461 = vmatprep.subr.bf16.mxu0 0
    %462 = vmatpush1.bf16.msra.mxu0 %v442
    %463 = vmatprep.subr.bf16.mxu0 0
    %464 = vmatpush1.bf16.msra.mxu0 %v443
    %465 = vmatprep.subr.bf16.mxu0 0
    %466 = vmatpush1.bf16.msra.mxu0 %v444
    %467 = vmatprep.subr.bf16.mxu0 0
    %468 = vmatpush1.bf16.msra.mxu0 %v445
    %469 = vmatprep.subr.bf16.mxu0 0
    %470 = vmatpush1.bf16.msra.mxu0 %v446
    %471 = vmatprep.subr.bf16.mxu0 0
    %472 = vmatpush1.bf16.msra.mxu0 0
    %473 = vmatprep.subr.bf16.mxu0 0
    %474 = vmatpush1.bf16.msra.mxu0 0
    %475 = vmatprep.subr.bf16.mxu0 0
    %476 = vmatpush1.bf16.msra.mxu0 0
    %477 = vmatprep.subr.bf16.mxu0 0
    %478 = vmatpush1.bf16.msra.mxu0 0
    %479 = vmatprep.subr.bf16.mxu0 0
    %480 = vmatpush1.bf16.msra.mxu0 0
    %481 = vmatprep.subr.bf16.mxu0 0
    %482 = vmatpush1.bf16.msra.mxu0 0
    %483 = vmatprep.subr.bf16.mxu0 0
    %484 = vmatpush1.bf16.msra.mxu0 0
    %485 = vmatprep.subr.bf16.mxu0 0
    %486 = vmatpush1.bf16.msra.mxu0 0
    %487 = vmatprep.mubr.bf16.mxu0 0
    %488 = vmatmul.mubr.bf16.gmra.mrb[0].mxu0 %v383
    %v489 = vpop.f32.mrb[0].mxu0
    %v490 = vadd.f32 %v405, %v489
    %v491 = vpop.f32.mrb[0].mxu0
    %v492 = vpop.f32.mrb[0].mxu0
    %v493 = vpop.f32.mrb[0].mxu0
    %494 = vdwg.mxu0
    %v495 = vmax.f32 %v490, 0.0
    %v496 = vpack.c.bf16 %v495, %v495
    %v497 = vld [vmem:[%s9] sm:$0xf]
    %v498 = vld [vmem:[%s9 + $0x4] sm:$0xf]
    %v499 = vld [vmem:[%s9 + $0x8] sm:$0xf]
    %v500 = vld [vmem:[%s9 + $0xc] sm:$0xf]
    %v501 = vld [vmem:[%s9 + $0x10] sm:$0xf]
    %v502 = vld [vmem:[%s9 + $0x14] sm:$0xf]
    %v503 = vld [vmem:[%s9 + $0x18] sm:$0xf]
    %v504 = vld [vmem:[%s9 + $0x1c] sm:$0xf]
    %v505 = vld [vmem:[%s9 + $0x20] sm:$0xf]
    %v506 = vld [vmem:[%s9 + $0x24] sm:$0xf]
    %v507 = vld [vmem:[%s9 + $0x28] sm:$0xf]
    %v508 = vld [vmem:[%s9 + $0x2c] sm:$0xf]
    %v509 = vld [vmem:[%s9 + $0x30] sm:$0xf]
    %v510 = vld [vmem:[%s9 + $0x34] sm:$0xf]
    %v511 = vld [vmem:[%s9 + $0x38] sm:$0xf]
    %v512 = vld [vmem:[%s9 + $0x3c] sm:$0xf]
    %v513 = vld [vmem:[%s10] sm:$0x1]
    %v515 = vlaneseq
    %v516 = vshrl.u32 %v515, 7
    %v517 = vsub.s32 0, %v516
    %v518 = vrot.slane %v513, %v517
    %v536 = vunpack.c.l.b16 %v497
    %v537 = vunpack.c.l.b16 %v498
    %v538 = vunpack.c.l.b16 %v499
    %v539 = vunpack.c.l.b16 %v500
    %v540 = vunpack.c.l.b16 %v501
    %v541 = vunpack.c.l.b16 %v502
    %v542 = vunpack.c.l.b16 %v503
    %v543 = vunpack.c.l.b16 %v504
    %v544 = vunpack.c.l.b16 %v505
    %v545 = vunpack.c.l.b16 %v506
    %v546 = vunpack.c.l.b16 %v507
    %v547 = vunpack.c.l.b16 %v508
    %v548 = vunpack.c.l.b16 %v509
    %v549 = vunpack.c.l.b16 %v510
    %v550 = vunpack.c.l.b16 %v511
    %v551 = vunpack.c.l.b16 %v512
    %v552 = vpack.c.b16 %v537, %v536
    %v553 = vpack.c.b16 %v539, %v538
    %v554 = vpack.c.b16 %v541, %v540
    %v555 = vpack.c.b16 %v543, %v542
    %v556 = vpack.c.b16 %v545, %v544
    %v557 = vpack.c.b16 %v547, %v546
    %v558 = vpack.c.b16 %v549, %v548
    %v559 = vpack.c.b16 %v551, %v550
    %568 = vmatprep.subr.bf16.mxu0 0
    %569 = vmatpush1.bf16.msra.mxu0 %v552
    %570 = vmatprep.subr.bf16.mxu0 0
    %571 = vmatpush1.bf16.msra.mxu0 %v553
    %572 = vmatprep.subr.bf16.mxu0 0
    %573 = vmatpush1.bf16.msra.mxu0 %v554
    %574 = vmatprep.subr.bf16.mxu0 0
    %575 = vmatpush1.bf16.msra.mxu0 %v555
    %576 = vmatprep.subr.bf16.mxu0 0
    %577 = vmatpush1.bf16.msra.mxu0 %v556
    %578 = vmatprep.subr.bf16.mxu0 0
    %579 = vmatpush1.bf16.msra.mxu0 %v557
    %580 = vmatprep.subr.bf16.mxu0 0
    %581 = vmatpush1.bf16.msra.mxu0 %v558
    %582 = vmatprep.subr.bf16.mxu0 0
    %583 = vmatpush1.bf16.msra.mxu0 %v559
    %584 = vmatprep.subr.bf16.mxu0 0
    %585 = vmatpush1.bf16.msra.mxu0 0
    %586 = vmatprep.subr.bf16.mxu0 0
    %587 = vmatpush1.bf16.msra.mxu0 0
    %588 = vmatprep.subr.bf16.mxu0 0
    %589 = vmatpush1.bf16.msra.mxu0 0
    %590 = vmatprep.subr.bf16.mxu0 0
    %591 = vmatpush1.bf16.msra.mxu0 0
    %592 = vmatprep.subr.bf16.mxu0 0
    %593 = vmatpush1.bf16.msra.mxu0 0
    %594 = vmatprep.subr.bf16.mxu0 0
    %595 = vmatpush1.bf16.msra.mxu0 0
    %596 = vmatprep.subr.bf16.mxu0 0
    %597 = vmatpush1.bf16.msra.mxu0 0
    %598 = vmatprep.subr.bf16.mxu0 0
    %599 = vmatpush1.bf16.msra.mxu0 0
    %600 = vmatprep.mubr.bf16.mxu0 0
    %601 = vmatmul.mubr.bf16.gmra.mrb[0].mxu0 %v496
    %v602 = vpop.f32.mrb[0].mxu0
    %v603 = vadd.f32 %v518, %v602
    %v604 = vpop.f32.mrb[0].mxu0
    %v605 = vpop.f32.mrb[0].mxu0
    %v606 = vpop.f32.mrb[0].mxu0
    %607 = vdwg.mxu0
    %vm608 = vcmask 130048
    %609 = vst.msk [vmem:[#allocation8] sm:$0xff] %vm608, %v603
    // Predicated region
    $region58: #{tpu_custom_call.1} parent=1 // pred_check
      _
    $region59: #{tpu_custom_call.1} parent=1 // pred_check_branch
      %611 = sbr.rel (0) target = $region61
    $region60: #{tpu_custom_call.1} parent=1 // pred_region
      %s613 = ssub.s32 128, 128
      %614 = vsyncadd [#allocation4], %s613
      %s616 = sshll.u32 [#allocation8], 4
      %s617 = int_to_ptr.vmem [resolvable:$true] %s616
      %619 = dma.vmem_to_hbm [thread:$0]  %s617, 128, %s11, [#allocation4]
    $region61: #{tpu_custom_call.1} parent=1 // pred_fallthru
      _
    // Predicated region
    $region62: #{tpu_custom_call.1} parent=1 // pred_check
      _
    $region63: #{tpu_custom_call.1} parent=1 // pred_check_branch
      %621 = sbr.rel (0) target = $region65
    $region64: #{tpu_custom_call.1} parent=1 // pred_region
      %622 = dma.done [#allocation4], 128
    $region65: #{tpu_custom_call.1} parent=1 // pred_fallthru
      _
    %623 = vsyncpa [#allocation3], 1
    %624 = vsyncpa [#allocation6], 1
    %625 = vsyncpa [#allocation4], 1

</llo_original>
